<compile_context>
chip_gen: v7x
topology: tpu7x:2x2x1
jax: 0.10.0
libtpu: 0.0.40
codegen_flags: <defaults>
</compile_context>

<pallas_src>
import functools
from typing import NamedTuple

import jax
import jax.numpy as jnp
from jax import lax
from jax.experimental import pallas as pl
from jax.experimental.pallas import tpu as pltpu

BN_EPS = 1e-5


def _round_up(x: int, m: int) -> int:
    return (x + m - 1) // m * m


def _sublane(dtype) -> int:
    # Native sublane multiple: f32 -> 8, bf16 -> 16, int8/fp8 -> 32.
    return 8 * (4 // jnp.dtype(dtype).itemsize)


def _vmem_budget() -> int:
    try:
        phys = pltpu.get_tpu_info().vmem_capacity_bytes
    except Exception:
        phys = 64 << 20          # conservative default (v7x per-TC VMEM)
    return int(phys) * 3 // 4    # leave headroom for Mosaic internal scratch


class TileConfig(NamedTuple):
    tn: int
    tk: int
    in_pad: int
    out_pad: int
    budget: int


def _tile_config(in_size, out_size, x_itemsize, w_itemsize) -> TileConfig:
    budget = _vmem_budget()
    in_pad128 = _round_up(in_size, 128)
    # >=2 output-feature tiles whenever out_size allows it (feeds both v7x TCs).
    tn = 128 if out_size <= 256 else 256
    tk = in_pad128               # prefer whole K resident: x reused across N tiles
    TB = 512                     # largest batch tile we will ever use

    def vmem_needed(tk_, tn_):
        acc = TB * tn_ * 4 if tk_ < in_pad128 else 0          # f32 accumulator
        return (2 * TB * tk_ * x_itemsize                     # x (double buffered)
                + 2 * tk_ * tn_ * w_itemsize                  # W^T
                + 2 * TB * tn_ * x_itemsize                   # y
                + acc + 16 * tn_ * 4)                         # params / stats

    while vmem_needed(tk, tn) > budget:
        if tk > 1024:
            tk = _round_up(tk // 2, 128)
        elif tn > 128:
            tn //= 2
        elif tk > 256:           # v5e advice: shrink tn first, keep tk >= 256
            tk = _round_up(tk // 2, 128)
        else:
            break

    return TileConfig(tn=tn, tk=tk, in_pad=_round_up(in_size, tk),
                      out_pad=_round_up(out_size, tn), budget=budget)


def prepare_params(w, b, gamma, beta, x_dtype=jnp.float32):
    """One-time parameter layout: W transposed+padded to (in_pad, out_pad)."""
    out_size, in_size = w.shape
    cfg = _tile_config(in_size, out_size,
                       jnp.dtype(x_dtype).itemsize, jnp.dtype(w.dtype).itemsize)
    wt = jnp.pad(jnp.transpose(w),
                 ((0, cfg.in_pad - in_size), (0, cfg.out_pad - out_size)))

    def pad1(v):
        return jnp.pad(v.astype(jnp.float32).reshape(1, -1),
                       ((0, 0), (0, cfg.out_pad - out_size)))

    return dict(wt=wt, b=pad1(b), gamma=pad1(gamma), beta=pad1(beta),
                cfg=cfg, in_size=in_size, out_size=out_size)


def _mlp_matmul_kernel(*refs, mode, out_act, batch, multi_k, k_axis):
    """Linear (+bias) with one of three epilogues.

    mode == "plain":    y = x@Wt + b (+ ReLU)                            -> o
    mode == "fused_bn": whole batch resident in the block; exact
                        training-mode BatchNorm folded into scale/shift  -> o
    mode == "stats":    y = x@Wt + b -> o, plus per-batch-tile partial
                        sum / sum-of-squares of the PRE-BIAS activations
                        (padded batch rows are exactly zero -> no masking)
    """
    it = iter(refs)
    x_ref, wt_ref, b_ref = next(it), next(it), next(it)
    g_ref = be_ref = None
    if mode == "fused_bn":
        g_ref, be_ref = next(it), next(it)
    o_ref = next(it)
    s_ref = ss_ref = None
    if mode == "stats":
        s_ref, ss_ref = next(it), next(it)
    acc_ref = next(it) if multi_k else None

    def epilogue(acc):                                   # acc: (tb, tn) f32, pre-bias
        bias = b_ref[...]                                # (1, tn) f32
        y = acc + bias
        if mode == "fused_bn":
            inv_b = 1.0 / float(batch)
            s = jnp.sum(acc, axis=0, keepdims=True)      # bias-shifted one-pass stats
            ss = jnp.sum(acc * acc, axis=0, keepdims=True)
            mean = s * inv_b                             # pre-bias mean
            var = jnp.maximum(ss * inv_b - mean * mean, 0.0)
            scale = g_ref[...] * lax.rsqrt(var + BN_EPS)
            shift = be_ref[...] - (mean + bias) * scale
            y = y * scale + shift
        elif mode == "stats":
            s_ref[...] = jnp.sum(acc, axis=0, keepdims=True)[None]
            ss_ref[...] = jnp.sum(acc * acc, axis=0, keepdims=True)[None]
        if out_act and mode != "stats":                  # ReLU after BN (2nd pass if tiled)
            y = jnp.maximum(y, 0.0)
        o_ref[...] = y.astype(o_ref.dtype)

    if multi_k:
        k = pl.program_id(k_axis)

        @pl.when(k == 0)
        def _():
            acc_ref[...] = jnp.zeros_like(acc_ref)

        acc_ref[...] += jnp.dot(x_ref[...], wt_ref[...],
                                preferred_element_type=jnp.float32)

        @pl.when(k == pl.num_programs(k_axis) - 1)
        def _():
            epilogue(acc_ref[...])
    else:
        # Single K block: no accumulator scratch, no zero fill, no acc RMW.
        epilogue(jnp.dot(x_ref[...], wt_ref[...],
                         preferred_element_type=jnp.float32))


def _affine_kernel(y_ref, scale_ref, shift_ref, o_ref, *, out_act):
    y = y_ref[...].astype(jnp.float32) * scale_ref[...] + shift_ref[...]
    if out_act:
        y = jnp.maximum(y, 0.0)
    o_ref[...] = y.astype(o_ref.dtype)


def mlp_forward(x, params, *, out_bn=True, out_act=False,
                batch_tile=512, k_tile=None):
    """MLP forward: Linear -> BatchNorm1d(train-mode stats) -> optional ReLU."""
    cfg: TileConfig = params["cfg"]
    in_size, out_size = params["in_size"], params["out_size"]
    assert x.shape[-1] == in_size

    orig_shape = x.shape
    if x.ndim > 2:
        # 3-D path (transpose/BN/transpose) == flatten leading dims for stats.
        x = x.reshape(-1, in_size)
    B = x.shape[0]

    tn = cfg.tn
    tk = cfg.tk if k_tile is None else k_tile
    assert tk % 128 == 0 and cfg.in_pad % tk == 0
    in_pad, out_pad = cfg.in_pad, cfg.out_pad
    n_tiles, k_tiles = out_pad // tn, in_pad // tk
    multi_k = k_tiles > 1

    sub = _sublane(x.dtype)
    batch_tile = max(int(batch_tile), 1)
    b_tiles = max(1, -(-B // batch_tile))
    tb = _round_up(-(-B // b_tiles), sub)
    b_pad = tb * b_tiles

    x_p = x
    if b_pad != B or in_pad != in_size:
        x_p = jnp.pad(x, ((0, b_pad - B), (0, in_pad - in_size)))

    itemsize = jnp.dtype(x.dtype).itemsize
    wsize = jnp.dtype(params["wt"].dtype).itemsize
    work = (2 * tb * tk * itemsize + 2 * tk * tn * wsize + 2 * tb * tn * itemsize
            + (tb * tn * 4 if multi_k else 0) + 16 * tn * 4)
    vmem_limit = min(cfg.budget, max(2 * work + (4 << 20), 32 << 20))

    mode = ("fused_bn" if (out_bn and b_tiles == 1)
            else ("stats" if out_bn else "plain"))

    if multi_k:
        grid = (b_tiles, n_tiles, k_tiles)
        sem = ("parallel", "parallel", "arbitrary")
        x_spec = pl.BlockSpec((tb, tk), lambda i, j, k: (i, k))
        w_spec = pl.BlockSpec((tk, tn), lambda i, j, k: (k, j))
        p_spec = pl.BlockSpec((1, tn), lambda i, j, k: (0, j))
        y_spec = pl.BlockSpec((tb, tn), lambda i, j, k: (i, j))
        st_spec = pl.BlockSpec((1, 1, tn), lambda i, j, k: (i, 0, j))
        scratch = [pltpu.VMEM((tb, tn), jnp.float32)]
        k_axis = 2
        x_reads = n_tiles            # x re-streamed once per N tile
    else:
        grid = (b_tiles, n_tiles)
        sem = ("parallel", "parallel")
        # Whole K resident: x block depends only on the batch tile, so it stays
        # in VMEM across every N tile (no redundant HBM streaming of x).
        x_spec = pl.BlockSpec((tb, in_pad), lambda i, j: (i, 0))
        w_spec = pl.BlockSpec((in_pad, tn), lambda i, j: (0, j))
        p_spec = pl.BlockSpec((1, tn), lambda i, j: (0, j))
        y_spec = pl.BlockSpec((tb, tn), lambda i, j: (i, j))
        st_spec = pl.BlockSpec((1, 1, tn), lambda i, j: (i, 0, j))
        scratch = []
        k_axis = None
        x_reads = 1

    in_specs = [x_spec, w_spec, p_spec]
    inputs = [x_p, params["wt"], params["b"]]
    if mode == "fused_bn":
        in_specs += [p_spec, p_spec]
        inputs += [params["gamma"], params["beta"]]

    out_shapes = [jax.ShapeDtypeStruct((b_pad, out_pad), x.dtype)]
    out_specs = [y_spec]
    if mode == "stats":
        out_shapes += [jax.ShapeDtypeStruct((b_tiles, 1, out_pad), jnp.float32)] * 2
        out_specs += [st_spec, st_spec]

    kernel = functools.partial(_mlp_matmul_kernel, mode=mode, out_act=out_act,
                               batch=B, multi_k=multi_k, k_axis=k_axis)

    cost = pl.CostEstimate(
        flops=2 * b_pad * in_pad * out_pad,
        transcendentals=out_pad if out_bn else 0,
        bytes_accessed=(b_pad * in_pad * itemsize * x_reads
                        + in_pad * out_pad * wsize * b_tiles
                        + b_pad * out_pad * itemsize))

    results = pl.pallas_call(
        kernel,
        out_shape=tuple(out_shapes),
        grid_spec=pltpu.PrefetchScalarGridSpec(
            num_scalar_prefetch=0,
            grid=grid,
            in_specs=in_specs,
            out_specs=tuple(out_specs),
            scratch_shapes=scratch),
        compiler_params=pltpu.CompilerParams(
            dimension_semantics=sem,
            vmem_limit_bytes=vmem_limit),
        cost_estimate=cost,
    )(*inputs)

    y = results[0]
    if mode == "stats":
        # Tiny cross-batch-tile reduction + folded scale/shift (pure XLA, O(out_pad)).
        s = jnp.sum(results[1], axis=0)                       # (1, out_pad) f32
        ss = jnp.sum(results[2], axis=0)
        mean = s / B                                          # pre-bias mean
        var = jnp.maximum(ss / B - mean * mean, 0.0)
        scale = params["gamma"] * lax.rsqrt(var + BN_EPS)
        shift = params["beta"] - (mean + params["b"]) * scale
        y = pl.pallas_call(
            functools.partial(_affine_kernel, out_act=out_act),
            out_shape=jax.ShapeDtypeStruct((b_pad, out_pad), x.dtype),
            grid_spec=pltpu.PrefetchScalarGridSpec(
                num_scalar_prefetch=0,
                grid=(b_tiles, n_tiles),
                in_specs=[pl.BlockSpec((tb, tn), lambda i, j: (i, j)),
                          pl.BlockSpec((1, tn), lambda i, j: (0, j)),
                          pl.BlockSpec((1, tn), lambda i, j: (0, j))],
                out_specs=pl.BlockSpec((tb, tn), lambda i, j: (i, j))),
            compiler_params=pltpu.CompilerParams(
                dimension_semantics=("parallel", "parallel"),
                vmem_limit_bytes=vmem_limit),
        )(y, scale, shift)

    # TODO(synk): training-mode dropout (outDp=True) would need pltpu.prng_*;
    # default outDp=False so it is a no-op here.  Eval-mode BN (running stats)
    # is also not implemented; this matches torch BatchNorm1d in train mode.

    out = y[:B, :out_size]
    if len(orig_shape) > 2:
        out = out.reshape(*orig_shape[:-1], out_size)
    return out


def _reference(x, w, b, gamma, beta, *, out_bn=True, out_act=False):
    y = x.astype(jnp.float32) @ w.astype(jnp.float32).T + b.astype(jnp.float32)
    if out_bn:
        mean = jnp.mean(y, axis=0, keepdims=True)
        var = jnp.mean((y - mean) ** 2, axis=0, keepdims=True)   # biased variance
        y = (y - mean) * lax.rsqrt(var + BN_EPS)
        y = y * gamma + beta
    if out_act:
        y = jnp.maximum(y, 0.0)
    return y.astype(x.dtype)


if __name__ == "__main__":
    key = jax.random.PRNGKey(0)
    kx, kw, kb, kg, kbe, kx2, kw2, kb2 = jax.random.split(key, 8)

    IN, OUT = 32, 16
    bound = 1.0 / (IN ** 0.5)
    w = jax.random.uniform(kw, (OUT, IN), jnp.float32, -bound, bound)
    b = jax.random.uniform(kb, (OUT,), jnp.float32, -bound, bound)
    gamma = jax.random.uniform(kg, (OUT,), jnp.float32, 0.5, 1.5)
    beta = 0.1 * jax.random.normal(kbe, (OUT,), jnp.float32)
    params = prepare_params(w, b, gamma, beta, x_dtype=jnp.float32)

    # Case 1: default flags (outBn=True, outAct=False) -- fused single-tile BN path.
    x1 = jax.random.normal(kx, (8, IN), jnp.float32)
    out1 = jax.block_until_ready(mlp_forward(x1, params))
    ref1 = _reference(x1, w, b, gamma, beta)
    assert out1.shape == (8, OUT)
    assert jnp.allclose(out1, ref1, atol=1e-3, rtol=1e-3), "case 1 mismatch"

    # Case 2: non-sublane-aligned batch + ReLU (padded-row handling).
    x2 = jax.random.normal(kx2, (10, IN), jnp.float32)
    out2 = jax.block_until_ready(mlp_forward(x2, params, out_act=True))
    ref2 = _reference(x2, w, b, gamma, beta, out_act=True)
    assert jnp.allclose(out2, ref2, atol=1e-3, rtol=1e-3), "case 2 mismatch"

    # Case 3: batch-tiled path (partial BN stats + second affine pass).
    x3 = jax.random.normal(kx, (20, IN), jnp.float32)
    out3 = jax.block_until_ready(
        mlp_forward(x3, params, out_act=True, batch_tile=8))
    ref3 = _reference(x3, w, b, gamma, beta, out_act=True)
    assert jnp.allclose(out3, ref3, atol=1e-3, rtol=1e-3), "case 3 mismatch"

    # Case 4: K-tiled reduction (accumulator scratch) combined with batch tiling.
    IN2 = 256
    bound2 = 1.0 / (IN2 ** 0.5)
    w2 = jax.random.uniform(kw2, (OUT, IN2), jnp.float32, -bound2, bound2)
    b2 = jax.random.uniform(kb2, (OUT,), jnp.float32, -bound2, bound2)
    params2 = prepare_params(w2, b2, gamma, beta, x_dtype=jnp.float32)
    x4 = jax.random.normal(kx2, (20, IN2), jnp.float32)
    out4 = jax.block_until_ready(
        mlp_forward(x4, params2, out_act=True, batch_tile=8, k_tile=128))
    ref4 = _reference(x4, w2, b2, gamma, beta, out_act=True)
    assert jnp.allclose(out4, ref4, atol=1e-3, rtol=1e-3), "case 4 mismatch"

    # Case 5: outBn=False path (Linear + ReLU only).
    out5 = jax.block_until_ready(
        mlp_forward(x1, params, out_bn=False, out_act=True))
    ref5 = _reference(x1, w, b, gamma, beta, out_bn=False, out_act=True)
    assert jnp.allclose(out5, ref5, atol=1e-3, rtol=1e-3), "case 5 mismatch"

    print("KERNEL_OK")
</pallas_src>

<mosaic_0001>
module attributes {stable_mosaic.version = 11 : i64} {
  func.func @_mlp_matmul_kernel(%arg0: i32, %arg1: i32, %arg2: memref<8x128xf32, #tpu.memory_space<vmem>>, %arg3: memref<128x128xf32, #tpu.memory_space<vmem>>, %arg4: memref<1x128xf32, #tpu.memory_space<vmem>>, %arg5: memref<1x128xf32, #tpu.memory_space<vmem>>, %arg6: memref<1x128xf32, #tpu.memory_space<vmem>>, %arg7: memref<8x128xf32, #tpu.memory_space<vmem>>) attributes {dimension_semantics = [#tpu.dimension_semantics<parallel>, #tpu.dimension_semantics<parallel>], iteration_bounds = array<i64: 1, 1>, scalar_prefetch = 0 : i64, scratch_operands = 0 : i64, tpu.core_type = #tpu.core_type<tc>, window_params = [{transform_indices = @transform_0, window_bounds = array<i64: 8, 128>}, {transform_indices = @transform_1, window_bounds = array<i64: 128, 128>}, {transform_indices = @transform_2, window_bounds = array<i64: 1, 128>}, {transform_indices = @transform_3, window_bounds = array<i64: 1, 128>}, {transform_indices = @transform_4, window_bounds = array<i64: 1, 128>}, {transform_indices = @transform_5, window_bounds = array<i64: 8, 128>}]} {
    %c0 = arith.constant 0 : index
    %c0_0 = arith.constant 0 : index
    %0 = vector.load %arg2[%c0, %c0_0] : memref<8x128xf32, #tpu.memory_space<vmem>>, vector<8x128xf32>
    %c0_1 = arith.constant 0 : index
    %c0_2 = arith.constant 0 : index
    %1 = vector.load %arg3[%c0_1, %c0_2] : memref<128x128xf32, #tpu.memory_space<vmem>>, vector<128x128xf32>
    %cst = arith.constant dense<0.000000e+00> : vector<8x128xf32>
    %2 = tpu.matmul %0, %1, %cst {dimension_numbers = #tpu.dot_dimension_numbers<[1], [0], [0], [1], [0, 0, 1, 1], [], []>} : vector<8x128xf32>, vector<128x128xf32>, vector<8x128xf32> -> vector<8x128xf32>
    %c0_3 = arith.constant 0 : index
    %c0_4 = arith.constant 0 : index
    %3 = vector.load %arg4[%c0_3, %c0_4] : memref<1x128xf32, #tpu.memory_space<vmem>>, vector<1x128xf32>
    %4 = vector.broadcast %3 : vector<1x128xf32> to vector<8x128xf32>
    %5 = arith.addf %2, %4 : vector<8x128xf32>
    %cst_5 = arith.constant dense<0.000000e+00> : vector<128xf32>
    %6 = vector.multi_reduction <add>, %2, %cst_5 [0] : vector<8x128xf32> to vector<128xf32>
    %7 = vector.shape_cast %6 : vector<128xf32> to vector<1x128xf32>
    %8 = arith.mulf %2, %2 : vector<8x128xf32>
    %cst_6 = arith.constant dense<0.000000e+00> : vector<128xf32>
    %9 = vector.multi_reduction <add>, %8, %cst_6 [0] : vector<8x128xf32> to vector<128xf32>
    %10 = vector.shape_cast %9 : vector<128xf32> to vector<1x128xf32>
    %cst_7 = arith.constant 1.250000e-01 : f32
    %11 = vector.broadcast %cst_7 : f32 to vector<1x128xf32>
    %12 = arith.mulf %7, %11 : vector<1x128xf32>
    %cst_8 = arith.constant 1.250000e-01 : f32
    %13 = vector.broadcast %cst_8 : f32 to vector<1x128xf32>
    %14 = arith.mulf %10, %13 : vector<1x128xf32>
    %15 = arith.mulf %12, %12 : vector<1x128xf32>
    %16 = arith.subf %14, %15 : vector<1x128xf32>
    %cst_9 = arith.constant 0.000000e+00 : f32
    %17 = vector.broadcast %cst_9 : f32 to vector<1x128xf32>
    %18 = arith.maximumf %16, %17 : vector<1x128xf32>
    %c0_10 = arith.constant 0 : index
    %c0_11 = arith.constant 0 : index
    %19 = vector.load %arg5[%c0_10, %c0_11] : memref<1x128xf32, #tpu.memory_space<vmem>>, vector<1x128xf32>
    %cst_12 = arith.constant 9.99999974E-6 : f32
    %20 = vector.broadcast %cst_12 : f32 to vector<1x128xf32>
    %21 = arith.addf %18, %20 : vector<1x128xf32>
    %22 = math.rsqrt %21 : vector<1x128xf32>
    %23 = arith.mulf %19, %22 : vector<1x128xf32>
    %c0_13 = arith.constant 0 : index
    %c0_14 = arith.constant 0 : index
    %24 = vector.load %arg6[%c0_13, %c0_14] : memref<1x128xf32, #tpu.memory_space<vmem>>, vector<1x128xf32>
    %25 = arith.addf %12, %3 : vector<1x128xf32>
    %26 = arith.mulf %25, %23 : vector<1x128xf32>
    %27 = arith.subf %24, %26 : vector<1x128xf32>
    %28 = vector.broadcast %23 : vector<1x128xf32> to vector<8x128xf32>
    %29 = arith.mulf %5, %28 : vector<8x128xf32>
    %30 = vector.broadcast %27 : vector<1x128xf32> to vector<8x128xf32>
    %31 = arith.addf %29, %30 : vector<8x128xf32>
    %c0_15 = arith.constant 0 : index
    %c0_16 = arith.constant 0 : index
    %32 = vector.load %arg7[%c0_15, %c0_16] : memref<8x128xf32, #tpu.memory_space<vmem>>, vector<8x128xf32>
    tpu.vector_store %arg7[%c0_15, %c0_16], %31 {strides = array<i32>} : memref<8x128xf32, #tpu.memory_space<vmem>>, vector<8x128xf32>,
    return
  }
  func.func @transform_0(%arg0: i32, %arg1: i32) -> (i32, i32) {
    %c0_i32 = arith.constant 0 : i32
    %c0_i32_0 = arith.constant 0 : i32
    return %arg0, %c0_i32 : i32, i32
  }
  func.func @transform_1(%arg0: i32, %arg1: i32) -> (i32, i32) {
    %c0_i32 = arith.constant 0 : i32
    %c0_i32_0 = arith.constant 0 : i32
    return %c0_i32, %arg1 : i32, i32
  }
  func.func @transform_2(%arg0: i32, %arg1: i32) -> (i32, i32) {
    %c0_i32 = arith.constant 0 : i32
    %c0_i32_0 = arith.constant 0 : i32
    return %c0_i32, %arg1 : i32, i32
  }
  func.func @transform_3(%arg0: i32, %arg1: i32) -> (i32, i32) {
    %c0_i32 = arith.constant 0 : i32
    %c0_i32_0 = arith.constant 0 : i32
    return %c0_i32, %arg1 : i32, i32
  }
  func.func @transform_4(%arg0: i32, %arg1: i32) -> (i32, i32) {
    %c0_i32 = arith.constant 0 : i32
    %c0_i32_0 = arith.constant 0 : i32
    return %c0_i32, %arg1 : i32, i32
  }
  func.func @transform_5(%arg0: i32, %arg1: i32) -> (i32, i32) {
    %c0_i32 = arith.constant 0 : i32
    return %arg0, %arg1 : i32, i32
  }
}

</mosaic_0001>

<llo_original>
// kernel: tpu_custom_call.1
$region0: #{tpu_custom_call.1}
  #allocation0 [shape = 'u32[]', space=smem, size = 0x4, offset = 0x4, fixed_abs, tag = 'smem constant byte address 0x4 - core index']
  #allocation1 [shape = 'u32[144,128]{1,0:T(1,128)}', space=vmem, size = 0x12000, scoped, tag = 'internal scratch']
  %s0 = inlined_call_operand.hbm [shape: f32[8,128], index: 0, kind: input, shape index: {}]
  %s1 = inlined_call_operand.hbm [shape: f32[128,128], index: 1, kind: input, shape index: {}]
  %s2 = inlined_call_operand.vmem [shape: f32[1,128], index: 2, kind: input, shape index: {}]
  %s3 = inlined_call_operand.vmem [shape: f32[1,128], index: 3, kind: input, shape index: {}]
  %s4 = inlined_call_operand.vmem [shape: f32[1,128], index: 4, kind: input, shape index: {}]
  %s5 = inlined_call_operand.hbm [shape: f32[8,128], index: 5, kind: output, shape index: {}]
  %s6 = sld [smem:[#allocation0]]
  $region38: #{tpu_custom_call.1} parent=0
    _
  %s8 = ssub.s32 1, %s6
  %s9 = scalar_select 0, %s8, %s6
  $region1: #{tpu_custom_call.1} parent=0
    #allocation2 [shape = 'u8[4096]{0}', space=vmem, size = 0x1000, scoped, tag = 'input window, operand 0, single buffered']
    #allocation3 [shape = 's32[1]{0}', space=sflag, size = 0x4, scoped, tag = 'scoped memory for tpu_custom_call.1']
    #allocation4 [shape = 's32[1]{0}', space=sflag, size = 0x4, scoped, tag = 'scoped memory for tpu_custom_call.1']
    #allocation5 [shape = 'u8[65536]{0}', space=vmem, size = 0x10000, scoped, tag = 'input window, operand 1, single buffered']
    #allocation6 [shape = 's32[1]{0}', space=sflag, size = 0x4, scoped, tag = 'scoped memory for tpu_custom_call.1']
    #allocation7 [shape = 'u8[4096]{0}', space=vmem, size = 0x1000, scoped, tag = 'output window, operand 0, single buffered']
    %10 = vsyncpa [#allocation3], 0
    %11 = vsyncpa [#allocation6], 0
    %12 = vsyncpa [#allocation4], 0
    // Predicated region
    $region2: #{tpu_custom_call.1} parent=1 // pred_check
      _
    $region3: #{tpu_custom_call.1} parent=1 // pred_check_branch
      %14 = sbr.rel (0) target = $region5
    $region4: #{tpu_custom_call.1} parent=1 // pred_region
      %s16 = ssub.s32 128, 128
      %17 = vsyncadd [#allocation3], %s16
      %s19 = sshll.u32 [#allocation2], 4
      %s20 = int_to_ptr.vmem [resolvable:$true] %s19
      %22 = dma.hbm_to_vmem [thread:$0]  %s0, 128, %s20, [#allocation3]
    $region5: #{tpu_custom_call.1} parent=1 // pred_fallthru
      _
    // Predicated region
    $region6: #{tpu_custom_call.1} parent=1 // pred_check
      _
    $region7: #{tpu_custom_call.1} parent=1 // pred_check_branch
      %24 = sbr.rel (0) target = $region9
    $region8: #{tpu_custom_call.1} parent=1 // pred_region
      %s26 = ssub.s32 2048, 2048
      %27 = vsyncadd [#allocation6], %s26
      %s28 = sshll.u32 [#allocation5], 4
      %s29 = int_to_ptr.vmem [resolvable:$true] %s28
      %34 = dma.hbm_to_vmem [thread:$0]  %s1, 2048, %s29, [#allocation6], 128, 128, 8
    $region9: #{tpu_custom_call.1} parent=1 // pred_fallthru
      _
    // Predicated region
    $region10: #{tpu_custom_call.1} parent=1 // pred_check
      _
    $region11: #{tpu_custom_call.1} parent=1 // pred_check_branch
      %36 = sbr.rel (0) target = $region13
    $region12: #{tpu_custom_call.1} parent=1 // pred_region
      _
    $region13: #{tpu_custom_call.1} parent=1 // pred_fallthru
      _
    // Predicated region
    $region14: #{tpu_custom_call.1} parent=1 // pred_check
      _
    $region15: #{tpu_custom_call.1} parent=1 // pred_check_branch
      %38 = sbr.rel (0) target = $region17
    $region16: #{tpu_custom_call.1} parent=1 // pred_region
      _
    $region17: #{tpu_custom_call.1} parent=1 // pred_fallthru
      _
    // Predicated region
    $region18: #{tpu_custom_call.1} parent=1 // pred_check
      _
    $region19: #{tpu_custom_call.1} parent=1 // pred_check_branch
      %40 = sbr.rel (0) target = $region21
    $region20: #{tpu_custom_call.1} parent=1 // pred_region
      _
    $region21: #{tpu_custom_call.1} parent=1 // pred_fallthru
      _
    // Predicated region
    $region22: #{tpu_custom_call.1} parent=1 // pred_check
      _
    $region23: #{tpu_custom_call.1} parent=1 // pred_check_branch
      %42 = sbr.rel (0) target = $region25
    $region24: #{tpu_custom_call.1} parent=1 // pred_region
      %43 = dma.done [#allocation3], 128
    $region25: #{tpu_custom_call.1} parent=1 // pred_fallthru
      _
    // Predicated region
    $region26: #{tpu_custom_call.1} parent=1 // pred_check
      _
    $region27: #{tpu_custom_call.1} parent=1 // pred_check_branch
      %45 = sbr.rel (0) target = $region29
    $region28: #{tpu_custom_call.1} parent=1 // pred_region
      %46 = dma.done [#allocation6], 2048
    $region29: #{tpu_custom_call.1} parent=1 // pred_fallthru
      _
    %v47 = vld [vmem:[#allocation2] sm:$0xff]
    %v48 = vld [vmem:[#allocation5] sm:$0xff]
    %v49 = vld [vmem:[#allocation5 + $0x8] sm:$0xff]
    %v50 = vld [vmem:[#allocation5 + $0x10] sm:$0xff]
    %v51 = vld [vmem:[#allocation5 + $0x18] sm:$0xff]
    %v52 = vld [vmem:[#allocation5 + $0x20] sm:$0xff]
    %v53 = vld [vmem:[#allocation5 + $0x28] sm:$0xff]
    %v54 = vld [vmem:[#allocation5 + $0x30] sm:$0xff]
    %v55 = vld [vmem:[#allocation5 + $0x38] sm:$0xff]
    %v56 = vld [vmem:[#allocation5 + $0x40] sm:$0xff]
    %v57 = vld [vmem:[#allocation5 + $0x48] sm:$0xff]
    %v58 = vld [vmem:[#allocation5 + $0x50] sm:$0xff]
    %v59 = vld [vmem:[#allocation5 + $0x58] sm:$0xff]
    %v60 = vld [vmem:[#allocation5 + $0x60] sm:$0xff]
    %v61 = vld [vmem:[#allocation5 + $0x68] sm:$0xff]
    %v62 = vld [vmem:[#allocation5 + $0x70] sm:$0xff]
    %v63 = vld [vmem:[#allocation5 + $0x78] sm:$0xff]
    %64 = vmatprep.subr.mxu0 0.0
    %65 = vmatpush1.msra.mxu0 %v48
    %66 = vmatprep.subr.mxu0 0.0
    %67 = vmatpush1.msra.mxu0 %v49
    %68 = vmatprep.subr.mxu0 0.0
    %69 = vmatpush1.msra.mxu0 %v50
    %70 = vmatprep.subr.mxu0 0.0
    %71 = vmatpush1.msra.mxu0 %v51
    %72 = vmatprep.subr.mxu0 0.0
    %73 = vmatpush1.msra.mxu0 %v52
    %74 = vmatprep.subr.mxu0 0.0
    %75 = vmatpush1.msra.mxu0 %v53
    %76 = vmatprep.subr.mxu0 0.0
    %77 = vmatpush1.msra.mxu0 %v54
    %78 = vmatprep.subr.mxu0 0.0
    %79 = vmatpush1.msra.mxu0 %v55
    %80 = vmatprep.subr.mxu0 0.0
    %81 = vmatpush1.msra.mxu0 %v56
    %82 = vmatprep.subr.mxu0 0.0
    %83 = vmatpush1.msra.mxu0 %v57
    %84 = vmatprep.subr.mxu0 0.0
    %85 = vmatpush1.msra.mxu0 %v58
    %86 = vmatprep.subr.mxu0 0.0
    %87 = vmatpush1.msra.mxu0 %v59
    %88 = vmatprep.subr.mxu0 0.0
    %89 = vmatpush1.msra.mxu0 %v60
    %90 = vmatprep.subr.mxu0 0.0
    %91 = vmatpush1.msra.mxu0 %v61
    %92 = vmatprep.subr.mxu0 0.0
    %93 = vmatpush1.msra.mxu0 %v62
    %94 = vmatprep.subr.mxu0 0.0
    %95 = vmatpush1.msra.mxu0 %v63
    %96 = vmatprep.subr.mxu0 0.0
    %97 = vmatpush1.msra.mxu0 0.0
    %98 = vmatprep.subr.mxu0 0.0
    %99 = vmatpush1.msra.mxu0 0.0
    %100 = vmatprep.subr.mxu0 0.0
    %101 = vmatpush1.msra.mxu0 0.0
    %102 = vmatprep.subr.mxu0 0.0
    %103 = vmatpush1.msra.mxu0 0.0
    %104 = vmatprep.subr.mxu0 0.0
    %105 = vmatpush1.msra.mxu0 0.0
    %106 = vmatprep.subr.mxu0 0.0
    %107 = vmatpush1.msra.mxu0 0.0
    %108 = vmatprep.subr.mxu0 0.0
    %109 = vmatpush1.msra.mxu0 0.0
    %110 = vmatprep.subr.mxu0 0.0
    %111 = vmatpush1.msra.mxu0 0.0
    %112 = vmatprep.subr.mxu0 0.0
    %113 = vmatpush1.msra.mxu0 0.0
    %114 = vmatprep.subr.mxu0 0.0
    %115 = vmatpush1.msra.mxu0 0.0
    %116 = vmatprep.subr.mxu0 0.0
    %117 = vmatpush1.msra.mxu0 0.0
    %118 = vmatprep.subr.mxu0 0.0
    %119 = vmatpush1.msra.mxu0 0.0
    %120 = vmatprep.subr.mxu0 0.0
    %121 = vmatpush1.msra.mxu0 0.0
    %122 = vmatprep.subr.mxu0 0.0
    %123 = vmatpush1.msra.mxu0 0.0
    %124 = vmatprep.subr.mxu0 0.0
    %125 = vmatpush1.msra.mxu0 0.0
    %126 = vmatprep.subr.mxu0 0.0
    %127 = vmatpush1.msra.mxu0 0.0
    %128 = vmatprep.mubr.f32.mxu0 0.0
    %129 = vmatmul.mubr.f32.gmra.mrb[0].mxu0 %v47
    %v130 = vpop.f32.mrb[0].mxu0
    %v131 = vadd.f32 0.0, %v130
    %v132 = vpop.f32.mrb[0].mxu0
    %133 = vdwg.mxu0
    %v134 = vld [vmem:[%s2] sm:$0x1]
    %v136 = vlaneseq
    %v137 = vshrl.u32 %v136, 7
    %v138 = vsub.s32 0, %v137
    %v139 = vrot.slane %v134, %v138
    %v141 = vadd.f32 %v131, %v139
    %v142 = vrot.slane %v131, 4
    %v143 = vadd.f32 %v131, %v142
    %v144 = vrot.slane %v143, 2
    %v145 = vadd.f32 %v143, %v144
    %v146 = vrot.slane %v145, 1
    %v147 = vadd.f32 %v145, %v146
    %v148 = vmul.f32 %v131, %v131
    %v149 = vrot.slane %v148, 4
    %v150 = vadd.f32 %v148, %v149
    %v151 = vrot.slane %v150, 2
    %v152 = vadd.f32 %v150, %v151
    %v153 = vrot.slane %v152, 1
    %v154 = vadd.f32 %v152, %v153
    %v155 = vmul.f32 %v147, 0.125
    %v156 = vmul.f32 %v154, 0.125
    %v157 = vmul.f32 %v155, %v155
    %v158 = vsub.f32 %v156, %v157
    %v159 = vmax.f32 %v158, 0.0
    %v160 = vld [vmem:[%s3] sm:$0x1]
    %v161 = vadd.f32 %v159, 1e-05
    %v162 = vrsqrt.pop %v161
    %v163 = vmul.f32 %v160, %v162
    %v164 = vld [vmem:[%s4] sm:$0x1]
    %v165 = vadd.f32 %v155, %v134
    %v166 = vmul.f32 %v165, %v163
    %v167 = vsub.f32 %v164, %v166
    %v169 = vlaneseq
    %v170 = vshrl.u32 %v169, 7
    %v171 = vsub.s32 0, %v170
    %v172 = vrot.slane %v163, %v171
    %v174 = vmul.f32 %v141, %v172
    %v176 = vlaneseq
    %v177 = vshrl.u32 %v176, 7
    %v178 = vsub.s32 0, %v177
    %v179 = vrot.slane %v167, %v178
    %v181 = vadd.f32 %v174, %v179
    %182 = vst [vmem:[#allocation7] sm:$0xff] %v181
    // Predicated region
    $region30: #{tpu_custom_call.1} parent=1 // pred_check
      _
    $region31: #{tpu_custom_call.1} parent=1 // pred_check_branch
      %184 = sbr.rel (0) target = $region33
    $region32: #{tpu_custom_call.1} parent=1 // pred_region
      %s186 = ssub.s32 128, 128
      %187 = vsyncadd [#allocation4], %s186
      %s189 = sshll.u32 [#allocation7], 4
      %s190 = int_to_ptr.vmem [resolvable:$true] %s189
      %192 = dma.vmem_to_hbm [thread:$0]  %s190, 128, %s5, [#allocation4]
    $region33: #{tpu_custom_call.1} parent=1 // pred_fallthru
      _
    // Predicated region
    $region34: #{tpu_custom_call.1} parent=1 // pred_check
      _
    $region35: #{tpu_custom_call.1} parent=1 // pred_check_branch
      %194 = sbr.rel (0) target = $region37
    $region36: #{tpu_custom_call.1} parent=1 // pred_region
      %195 = dma.done [#allocation4], 128
    $region37: #{tpu_custom_call.1} parent=1 // pred_fallthru
      _
    %196 = vsyncpa [#allocation3], 1
    %197 = vsyncpa [#allocation6], 1
    %198 = vsyncpa [#allocation4], 1

</llo_original>
